<compile_context>
chip_gen: v7x
topology: tpu7x:2x2x1
jax: 0.10.0
libtpu: 0.0.40
codegen_flags: <defaults>
</compile_context>

<pallas_src>
import jax
import jax.numpy as jnp
from jax.experimental import pallas as pl
from jax.experimental.pallas import tpu as pltpu


# ----------------------------------------------------------------------------
# Fused kernel: [resample 1x1 conv] -> causal dilated conv -> ReLU -> (+x) -> ReLU
# ----------------------------------------------------------------------------
def _make_resblock_kernel(kernel_size: int, dilation: int, has_resample: bool):
    pad = (kernel_size - 1) * dilation

    def kernel(*refs):
        if has_resample:
            x_ref, wr_ref, br_ref, wc_ref, bc_ref, o_ref = refs
        else:
            x_ref, wc_ref, bc_ref, o_ref = refs

        x = x_ref[0]                                    # (Cin, T), T on lanes
        t = x.shape[-1]

        if has_resample:
            # 1x1 conv == matmul over channels (effective weight-normed W).
            x = (jnp.dot(wr_ref[...], x, preferred_element_type=jnp.float32)
                 + br_ref[...])                         # (Cout, T)

        c_out = wc_ref.shape[1]

        # Causal dilated conv: left-pad by (K-1)*dilation once, then K shifted
        # channel-matmuls (all static slices, all resident in VMEM/vregs).
        if pad > 0:
            xp = jnp.concatenate(
                [jnp.zeros((c_out, pad), jnp.float32), x], axis=1)  # (Cout, T+pad)
        else:
            xp = x

        acc = jnp.zeros((c_out, t), jnp.float32)
        for k in range(kernel_size):                    # static, unrolled
            xk = xp[:, k * dilation:k * dilation + t]   # (Cout, T)
            acc = acc + jnp.dot(wc_ref[k], xk,
                                preferred_element_type=jnp.float32)

        y = jnp.maximum(acc + bc_ref[...], 0.0)         # ReLU (bias added once)
        # TODO(synk): dropout (identity at inference) would be applied to y here.
        o_ref[0] = jnp.maximum(x + y, 0.0)              # ReLU(x + y)

    return kernel


def residual_block_forward(x, params, *, kernel_size, dilation):
    """x: (N, Cin, T) float32 -> (N, Cout, T) float32."""
    n, c_in, t = x.shape
    wc = params["conv_w"]                               # (K, Cout, Cout)
    bc = params["conv_b"]                               # (Cout,)
    wr = params["res_w"]                                # (Cout, Cin) or None
    br = params["res_b"]
    c_out = wc.shape[1]
    has_resample = wr is not None

    inputs = [x]
    in_specs = [pl.BlockSpec((1, c_in, t), lambda i: (i, 0, 0))]
    if has_resample:
        inputs += [wr, br.reshape(c_out, 1)]
        in_specs += [pl.BlockSpec((c_out, c_in), lambda i: (0, 0)),
                     pl.BlockSpec((c_out, 1), lambda i: (0, 0))]
    inputs += [wc, bc.reshape(c_out, 1)]
    in_specs += [pl.BlockSpec((kernel_size, c_out, c_out), lambda i: (0, 0, 0)),
                 pl.BlockSpec((c_out, 1), lambda i: (0, 0))]

    return pl.pallas_call(
        _make_resblock_kernel(kernel_size, dilation, has_resample),
        grid=(n,),
        in_specs=in_specs,
        out_specs=pl.BlockSpec((1, c_out, t), lambda i: (i, 0, 0)),
        out_shape=jax.ShapeDtypeStruct((n, c_out, t), jnp.float32),
        compiler_params=pltpu.CompilerParams(
            dimension_semantics=("parallel",)),
    )(*inputs)


# ----------------------------------------------------------------------------
# Parameters (weight_norm folded into effective weights on the host).
# ----------------------------------------------------------------------------
def _weight_norm(v, g):
    """Effective weight of nn.utils.weight_norm: g * v / ||v|| per out channel."""
    norm = jnp.sqrt(jnp.sum(v.reshape(v.shape[0], -1) ** 2, axis=1))
    scale = (g / norm).reshape((-1,) + (1,) * (v.ndim - 1))
    return v * scale


def init_residual_block(key, in_channels, out_channels, kernel_size):
    ks = jax.random.split(key, 6)
    # convolution = weight_norm(Conv1d(out, out, K)), weight ~ N(0, 0.01)
    vc = 0.01 * jax.random.normal(ks[0], (out_channels, out_channels, kernel_size),
                                  jnp.float32)
    gc = 1.0 + 0.1 * jax.random.normal(ks[1], (out_channels,), jnp.float32)
    wc_oik = _weight_norm(vc, gc)                       # (Cout, Cout, K) OIK
    p = {
        "conv_w_oik": wc_oik,                           # for the JAX reference
        "conv_w": jnp.transpose(wc_oik, (2, 0, 1)),     # (K, Cout, Cout) for kernel
        "conv_b": 0.05 * jax.random.normal(ks[2], (out_channels,), jnp.float32),
        "res_w": None,
        "res_b": None,
    }
    if in_channels != out_channels:
        vr = 0.01 * jax.random.normal(ks[3], (out_channels, in_channels, 1),
                                      jnp.float32)
        gr = 1.0 + 0.1 * jax.random.normal(ks[4], (out_channels,), jnp.float32)
        p["res_w"] = _weight_norm(vr, gr)[:, :, 0]      # (Cout, Cin)
        p["res_b"] = 0.05 * jax.random.normal(ks[5], (out_channels,), jnp.float32)
    return p


# ----------------------------------------------------------------------------
# Pure-JAX reference (independent path via lax.conv_general_dilated).
# ----------------------------------------------------------------------------
def residual_block_ref(x, params, *, kernel_size, dilation):
    if params["res_w"] is not None:
        x = (jnp.einsum("oi,nit->not", params["res_w"], x)
             + params["res_b"][None, :, None])
    pad = (kernel_size - 1) * dilation
    xp = jnp.pad(x, ((0, 0), (0, 0), (pad, 0)))
    y = jax.lax.conv_general_dilated(
        xp, params["conv_w_oik"], window_strides=(1,), padding="VALID",
        rhs_dilation=(dilation,), dimension_numbers=("NCH", "OIH", "NCH"))
    y = jax.nn.relu(y + params["conv_b"][None, :, None])
    return jax.nn.relu(x + y)


# ----------------------------------------------------------------------------
if __name__ == "__main__":
    root = jax.random.PRNGKey(0)
    k_p1, k_p2, k_x1, k_x2 = jax.random.split(root, 4)

    # Case 1: in_channels != out_channels -> resample (1x1 conv) path active.
    N, Cin, Cout, K, DIL, T = 2, 16, 24, 3, 2, 128
    params1 = init_residual_block(k_p1, Cin, Cout, K)
    x1 = jax.random.normal(k_x1, (N, Cin, T), jnp.float32)
    out1 = residual_block_forward(x1, params1, kernel_size=K, dilation=DIL)
    jax.block_until_ready(out1)
    ref1 = residual_block_ref(x1, params1, kernel_size=K, dilation=DIL)
    assert out1.shape == (N, Cout, T)
    assert jnp.allclose(out1, ref1, atol=1e-4, rtol=1e-4)

    # Case 2: in_channels == out_channels -> no resample, dilation 1.
    params2 = init_residual_block(k_p2, Cout, Cout, K)
    x2 = jax.random.normal(k_x2, (N, Cout, T), jnp.float32)
    out2 = residual_block_forward(x2, params2, kernel_size=K, dilation=1)
    jax.block_until_ready(out2)
    ref2 = residual_block_ref(x2, params2, kernel_size=K, dilation=1)
    assert out2.shape == (N, Cout, T)
    assert jnp.allclose(out2, ref2, atol=1e-4, rtol=1e-4)

    print("KERNEL_OK")
</pallas_src>

<mosaic_0001>
module attributes {stable_mosaic.version = 11 : i64} {
  func.func @kernel(%arg0: i32, %arg1: memref<1x16x128xf32, #tpu.memory_space<vmem>>, %arg2: memref<24x16xf32, #tpu.memory_space<vmem>>, %arg3: memref<24x1xf32, #tpu.memory_space<vmem>>, %arg4: memref<3x24x24xf32, #tpu.memory_space<vmem>>, %arg5: memref<24x1xf32, #tpu.memory_space<vmem>>, %arg6: memref<1x24x128xf32, #tpu.memory_space<vmem>>) attributes {dimension_semantics = [#tpu.dimension_semantics<parallel>], iteration_bounds = array<i64: 2>, scalar_prefetch = 0 : i64, scratch_operands = 0 : i64, tpu.core_type = #tpu.core_type<tc>, window_params = [{transform_indices = @transform_0, window_bounds = array<i64: 1, 16, 128>}, {pipeline_mode = #tpu.pipeline_mode<synchronous>, transform_indices = @transform_1, window_bounds = array<i64: 24, 16>}, {pipeline_mode = #tpu.pipeline_mode<synchronous>, transform_indices = @transform_2, window_bounds = array<i64: 24, 1>}, {pipeline_mode = #tpu.pipeline_mode<synchronous>, transform_indices = @transform_3, window_bounds = array<i64: 3, 24, 24>}, {pipeline_mode = #tpu.pipeline_mode<synchronous>, transform_indices = @transform_4, window_bounds = array<i64: 24, 1>}, {transform_indices = @transform_5, window_bounds = array<i64: 1, 24, 128>}]} {
    %c0 = arith.constant 0 : index
    %c0_0 = arith.constant 0 : index
    %c0_1 = arith.constant 0 : index
    %0 = vector.load %arg1[%c0, %c0_0, %c0_1] : memref<1x16x128xf32, #tpu.memory_space<vmem>>, vector<1x16x128xf32>
    %1 = vector.shape_cast %0 : vector<1x16x128xf32> to vector<16x128xf32>
    %c0_2 = arith.constant 0 : index
    %c0_3 = arith.constant 0 : index
    %2 = vector.load %arg2[%c0_2, %c0_3] : memref<24x16xf32, #tpu.memory_space<vmem>>, vector<24x16xf32>
    %cst = arith.constant dense<0.000000e+00> : vector<24x128xf32>
    %3 = tpu.matmul %2, %1, %cst {dimension_numbers = #tpu.dot_dimension_numbers<[1], [0], [0], [1], [0, 0, 1, 1], [], []>} : vector<24x16xf32>, vector<16x128xf32>, vector<24x128xf32> -> vector<24x128xf32>
    %c0_4 = arith.constant 0 : index
    %c0_5 = arith.constant 0 : index
    %4 = vector.load %arg3[%c0_4, %c0_5] : memref<24x1xf32, #tpu.memory_space<vmem>>, vector<24x1xf32>
    %5 = vector.broadcast %4 : vector<24x1xf32> to vector<24x128xf32>
    %6 = arith.addf %3, %5 : vector<24x128xf32>
    %cst_6 = arith.constant 0.000000e+00 : f32
    %7 = vector.broadcast %cst_6 : f32 to vector<24x4xf32>
    %8 = tpu.concatenate %7, %6 in 1 : vector<24x4xf32>, vector<24x128xf32> -> vector<24x132xf32>
    %cst_7 = arith.constant 0.000000e+00 : f32
    %9 = vector.broadcast %cst_7 : f32 to vector<24x128xf32>
    %10 = vector.extract_strided_slice %8 {offsets = [0, 0], sizes = [24, 128], strides = [1, 1]} : vector<24x132xf32> to vector<24x128xf32>
    %c0_8 = arith.constant 0 : index
    %c0_9 = arith.constant 0 : index
    %c0_10 = arith.constant 0 : index
    %11 = vector.load %arg4[%c0_8, %c0_9, %c0_10] : memref<3x24x24xf32, #tpu.memory_space<vmem>>, vector<1x24x24xf32>
    %12 = vector.shape_cast %11 : vector<1x24x24xf32> to vector<24x24xf32>
    %cst_11 = arith.constant dense<0.000000e+00> : vector<24x128xf32>
    %13 = tpu.matmul %12, %10, %cst_11 {dimension_numbers = #tpu.dot_dimension_numbers<[1], [0], [0], [1], [0, 0, 1, 1], [], []>} : vector<24x24xf32>, vector<24x128xf32>, vector<24x128xf32> -> vector<24x128xf32>
    %14 = arith.addf %9, %13 : vector<24x128xf32>
    %15 = vector.extract_strided_slice %8 {offsets = [0, 2], sizes = [24, 128], strides = [1, 1]} : vector<24x132xf32> to vector<24x128xf32>
    %c1 = arith.constant 1 : index
    %c0_12 = arith.constant 0 : index
    %c0_13 = arith.constant 0 : index
    %16 = vector.load %arg4[%c1, %c0_12, %c0_13] : memref<3x24x24xf32, #tpu.memory_space<vmem>>, vector<1x24x24xf32>
    %17 = vector.shape_cast %16 : vector<1x24x24xf32> to vector<24x24xf32>
    %cst_14 = arith.constant dense<0.000000e+00> : vector<24x128xf32>
    %18 = tpu.matmul %17, %15, %cst_14 {dimension_numbers = #tpu.dot_dimension_numbers<[1], [0], [0], [1], [0, 0, 1, 1], [], []>} : vector<24x24xf32>, vector<24x128xf32>, vector<24x128xf32> -> vector<24x128xf32>
    %19 = arith.addf %14, %18 : vector<24x128xf32>
    %20 = vector.extract_strided_slice %8 {offsets = [0, 4], sizes = [24, 128], strides = [1, 1]} : vector<24x132xf32> to vector<24x128xf32>
    %c2 = arith.constant 2 : index
    %c0_15 = arith.constant 0 : index
    %c0_16 = arith.constant 0 : index
    %21 = vector.load %arg4[%c2, %c0_15, %c0_16] : memref<3x24x24xf32, #tpu.memory_space<vmem>>, vector<1x24x24xf32>
    %22 = vector.shape_cast %21 : vector<1x24x24xf32> to vector<24x24xf32>
    %cst_17 = arith.constant dense<0.000000e+00> : vector<24x128xf32>
    %23 = tpu.matmul %22, %20, %cst_17 {dimension_numbers = #tpu.dot_dimension_numbers<[1], [0], [0], [1], [0, 0, 1, 1], [], []>} : vector<24x24xf32>, vector<24x128xf32>, vector<24x128xf32> -> vector<24x128xf32>
    %24 = arith.addf %19, %23 : vector<24x128xf32>
    %c0_18 = arith.constant 0 : index
    %c0_19 = arith.constant 0 : index
    %25 = vector.load %arg5[%c0_18, %c0_19] : memref<24x1xf32, #tpu.memory_space<vmem>>, vector<24x1xf32>
    %26 = vector.broadcast %25 : vector<24x1xf32> to vector<24x128xf32>
    %27 = arith.addf %24, %26 : vector<24x128xf32>
    %cst_20 = arith.constant 0.000000e+00 : f32
    %28 = vector.broadcast %cst_20 : f32 to vector<24x128xf32>
    %29 = arith.maximumf %27, %28 : vector<24x128xf32>
    %30 = arith.addf %6, %29 : vector<24x128xf32>
    %cst_21 = arith.constant 0.000000e+00 : f32
    %31 = vector.broadcast %cst_21 : f32 to vector<24x128xf32>
    %32 = arith.maximumf %30, %31 : vector<24x128xf32>
    %c0_22 = arith.constant 0 : index
    %c0_23 = arith.constant 0 : index
    %c0_24 = arith.constant 0 : index
    %33 = vector.load %arg6[%c0_22, %c0_23, %c0_24] : memref<1x24x128xf32, #tpu.memory_space<vmem>>, vector<1x24x128xf32>
    %34 = vector.shape_cast %33 : vector<1x24x128xf32> to vector<24x128xf32>
    %35 = vector.shape_cast %32 : vector<24x128xf32> to vector<1x24x128xf32>
    tpu.vector_store %arg6[%c0_22, %c0_23, %c0_24], %35 {strides = array<i32>} : memref<1x24x128xf32, #tpu.memory_space<vmem>>, vector<1x24x128xf32>,
    return
  }
  func.func @transform_0(%arg0: i32) -> (i32, i32, i32) {
    %c0_i32 = arith.constant 0 : i32
    %c0_i32_0 = arith.constant 0 : i32
    %c0_i32_1 = arith.constant 0 : i32
    return %arg0, %c0_i32, %c0_i32_0 : i32, i32, i32
  }
  func.func @transform_1(%arg0: i32) -> (i32, i32) {
    %c0_i32 = arith.constant 0 : i32
    %c0_i32_0 = arith.constant 0 : i32
    %c0_i32_1 = arith.constant 0 : i32
    return %c0_i32, %c0_i32_0 : i32, i32
  }
  func.func @transform_2(%arg0: i32) -> (i32, i32) {
    %c0_i32 = arith.constant 0 : i32
    %c0_i32_0 = arith.constant 0 : i32
    %c0_i32_1 = arith.constant 0 : i32
    return %c0_i32, %c0_i32_0 : i32, i32
  }
  func.func @transform_3(%arg0: i32) -> (i32, i32, i32) {
    %c0_i32 = arith.constant 0 : i32
    %c0_i32_0 = arith.constant 0 : i32
    %c0_i32_1 = arith.constant 0 : i32
    %c0_i32_2 = arith.constant 0 : i32
    return %c0_i32, %c0_i32_0, %c0_i32_1 : i32, i32, i32
  }
  func.func @transform_4(%arg0: i32) -> (i32, i32) {
    %c0_i32 = arith.constant 0 : i32
    %c0_i32_0 = arith.constant 0 : i32
    %c0_i32_1 = arith.constant 0 : i32
    return %c0_i32, %c0_i32_0 : i32, i32
  }
  func.func @transform_5(%arg0: i32) -> (i32, i32, i32) {
    %c0_i32 = arith.constant 0 : i32
    %c0_i32_0 = arith.constant 0 : i32
    %c0_i32_1 = arith.constant 0 : i32
    return %arg0, %c0_i32, %c0_i32_0 : i32, i32, i32
  }
}

</mosaic_0001>

<llo_original>
// kernel: tpu_custom_call.1
$region0: #{tpu_custom_call.1}
  #allocation0 [shape = 'u32[]', space=smem, size = 0x4, offset = 0x4, fixed_abs, tag = 'smem constant byte address 0x4 - core index']
  #allocation1 [shape = 'u32[144,128]{1,0:T(1,128)}', space=vmem, size = 0x12000, scoped, tag = 'internal scratch']
  %s0 = inlined_call_operand.hbm [shape: f32[2,16,128], index: 0, kind: input, shape index: {}]
  %s1 = inlined_call_operand.vmem [shape: f32[24,16], index: 1, kind: input, shape index: {}]
  %s2 = inlined_call_operand.vmem [shape: f32[24,1], index: 2, kind: input, shape index: {}]
  %s3 = inlined_call_operand.vmem [shape: f32[3,24,24], index: 3, kind: input, shape index: {}]
  %s4 = inlined_call_operand.vmem [shape: f32[24,1], index: 4, kind: input, shape index: {}]
  %s5 = inlined_call_operand.hbm [shape: f32[2,24,128], index: 5, kind: output, shape index: {}]
  %s6 = sld [smem:[#allocation0]]
  $region57: #{tpu_custom_call.1} parent=0
    _
  %s8 = ssub.s32 1, %s6
  %s9 = scalar_select 0, %s8, %s6
  $region1: #{tpu_custom_call.1} parent=0
    #allocation2 [shape = 'u8[16384]{0}', space=vmem, size = 0x4000, scoped, tag = 'input window, operand 0']
    #allocation3 [shape = 's32[2]{0}', space=sflag, size = 0x8, scoped, tag = 'scoped memory for tpu_custom_call.1']
    #allocation4 [shape = 's32[2]{0}', space=sflag, size = 0x8, scoped, tag = 'scoped memory for tpu_custom_call.1']
    #allocation5 [shape = 'u8[24576]{0}', space=vmem, size = 0x6000, scoped, tag = 'output window, operand 0']
    %10 = vsyncpa [#allocation3], 0
    %s11 = scalar_lea.sflag [#allocation3], 1
    %12 = vsyncpa %s11, 0
    %13 = vsyncpa [#allocation4], 0
    %s14 = scalar_lea.sflag [#allocation4], 1
    %15 = vsyncpa %s14, 0
    loop: start=0, step=1, limit=4
    $region2: #{tpu_custom_call.1} parent=1 // loop_pre_header
      _
    $region3: #{tpu_custom_call.1} parent=1 // loop_header
      %s17 = sphi 0, %s21
      %p18 = scmp.ge.s32.totalorder %s17, 4
      %s27 = sphi 0, %s29
      %s30 = sphi 0, %s27
      %s31 = sphi 0, %s30
      %s47 = sphi 0, %s31
      %s51 = sphi 0, %s51
      %s53 = sphi 0, %s51
      %s54 = sphi 0, %s53
      %s68 = sphi 0, %s54
      %s72 = sphi 0, %s72
      %s74 = sphi 0, %s72
      %s75 = sphi 0, %s74
      %s89 = sphi 0, %s75
      %s93 = sphi 0, %s93
      %s95 = sphi 0, %s93
      %s96 = sphi 0, %s95
      %s110 = sphi 0, %s96
      %s114 = sphi 0, %s114
      %s116 = sphi 0, %s114
      %s117 = sphi 0, %s116
      %s131 = sphi 0, %s117
      %s137 = sphi 0, %s139
      %s140 = sphi 0, %s137
      %s141 = sphi 0, %s140
      %s157 = sphi 0, %s141
    $region4: #{tpu_custom_call.1} parent=1 // loop_header_branch
      %20 = sbr.rel (%p18) target = $region8
    $region5: #{tpu_custom_call.1} parent=1 // loop_body
      %s22 = ssub.s32 %s17, 1
      %s23 = ssub.s32 %s17, 2
      %s24 = sadd.s32 %s17, 1
      %s25 = ssub.s32 %s17, %s24
      %p26 = scmp.eq.s32.totalorder %s25, 0
      %s28 = sadd.s32 %s27, 1
      %s29 = scalar_select %p26, %s27, %s28
      %p32 = pneg %p26
      %p33 = scmp.eq.s32.totalorder %s17, 1
      %p34 = por %p32, %p33
      %p35 = scmp.ne.s32.totalorder %s27, %s30
      %p36 = scmp.eq.s32.totalorder %s17, 0
      %p37 = por %p35, %p36
      %p38 = scmp.ne.s32.totalorder %s27, %s30
      %p39 = scmp.eq.s32.totalorder %s22, 1
      %p40 = por %p38, %p39
      %p41 = scmp.ne.s32.totalorder %s30, %s31
      %p42 = scmp.eq.s32.totalorder %s22, 0
      %p43 = por %p41, %p42
      %p44 = scmp.ne.s32.totalorder %s30, %s31
      %p45 = scmp.eq.s32.totalorder %s23, 1
      %p46 = por %p44, %p45
      %p48 = scmp.ne.s32.totalorder %s31, %s47
      %p49 = scmp.eq.s32.totalorder %s23, 0
      %p50 = por %p48, %p49
      %s52 = sadd.s32 %s51, 1
      %p55 = scmp.eq.s32.totalorder %s17, 1
      %p56 = scmp.ne.s32.totalorder %s51, %s53
      %p57 = scmp.eq.s32.totalorder %s17, 0
      %p58 = por %p56, %p57
      %p59 = scmp.ne.s32.totalorder %s51, %s53
      %p60 = scmp.eq.s32.totalorder %s22, 1
      %p61 = por %p59, %p60
      %p62 = scmp.ne.s32.totalorder %s53, %s54
      %p63 = scmp.eq.s32.totalorder %s22, 0
      %p64 = por %p62, %p63
      %p65 = scmp.ne.s32.totalorder %s53, %s54
      %p66 = scmp.eq.s32.totalorder %s23, 1
      %p67 = por %p65, %p66
      %p69 = scmp.ne.s32.totalorder %s54, %s68
      %p70 = scmp.eq.s32.totalorder %s23, 0
      %p71 = por %p69, %p70
      %s73 = sadd.s32 %s72, 1
      %p76 = scmp.eq.s32.totalorder %s17, 1
      %p77 = scmp.ne.s32.totalorder %s72, %s74
      %p78 = scmp.eq.s32.totalorder %s17, 0
      %p79 = por %p77, %p78
      %p80 = scmp.ne.s32.totalorder %s72, %s74
      %p81 = scmp.eq.s32.totalorder %s22, 1
      %p82 = por %p80, %p81
      %p83 = scmp.ne.s32.totalorder %s74, %s75
      %p84 = scmp.eq.s32.totalorder %s22, 0
      %p85 = por %p83, %p84
      %p86 = scmp.ne.s32.totalorder %s74, %s75
      %p87 = scmp.eq.s32.totalorder %s23, 1
      %p88 = por %p86, %p87
      %p90 = scmp.ne.s32.totalorder %s75, %s89
      %p91 = scmp.eq.s32.totalorder %s23, 0
      %p92 = por %p90, %p91
      %s94 = sadd.s32 %s93, 1
      %p97 = scmp.eq.s32.totalorder %s17, 1
      %p98 = scmp.ne.s32.totalorder %s93, %s95
      %p99 = scmp.eq.s32.totalorder %s17, 0
      %p100 = por %p98, %p99
      %p101 = scmp.ne.s32.totalorder %s93, %s95
      %p102 = scmp.eq.s32.totalorder %s22, 1
      %p103 = por %p101, %p102
      %p104 = scmp.ne.s32.totalorder %s95, %s96
      %p105 = scmp.eq.s32.totalorder %s22, 0
      %p106 = por %p104, %p105
      %p107 = scmp.ne.s32.totalorder %s95, %s96
      %p108 = scmp.eq.s32.totalorder %s23, 1
      %p109 = por %p107, %p108
      %p111 = scmp.ne.s32.totalorder %s96, %s110
      %p112 = scmp.eq.s32.totalorder %s23, 0
      %p113 = por %p111, %p112
      %s115 = sadd.s32 %s114, 1
      %p118 = scmp.eq.s32.totalorder %s17, 1
      %p119 = scmp.ne.s32.totalorder %s114, %s116
      %p120 = scmp.eq.s32.totalorder %s17, 0
      %p121 = por %p119, %p120
      %p122 = scmp.ne.s32.totalorder %s114, %s116
      %p123 = scmp.eq.s32.totalorder %s22, 1
      %p124 = por %p122, %p123
      %p125 = scmp.ne.s32.totalorder %s116, %s117
      %p126 = scmp.eq.s32.totalorder %s22, 0
      %p127 = por %p125, %p126
      %p128 = scmp.ne.s32.totalorder %s116, %s117
      %p129 = scmp.eq.s32.totalorder %s23, 1
      %p130 = por %p128, %p129
      %p132 = scmp.ne.s32.totalorder %s117, %s131
      %p133 = scmp.eq.s32.totalorder %s23, 0
      %p134 = por %p132, %p133
      %s135 = ssub.s32 %s17, %s24
      %p136 = scmp.eq.s32.totalorder %s135, 0
      %s138 = sadd.s32 %s137, 1
      %s139 = scalar_select %p136, %s137, %s138
      %p142 = pneg %p136
      %p143 = scmp.eq.s32.totalorder %s17, 1
      %p144 = por %p142, %p143
      %p145 = scmp.ne.s32.totalorder %s137, %s140
      %p146 = scmp.eq.s32.totalorder %s17, 0
      %p147 = por %p145, %p146
      %p148 = scmp.ne.s32.totalorder %s137, %s140
      %p149 = scmp.eq.s32.totalorder %s22, 1
      %p150 = por %p148, %p149
      %p151 = scmp.ne.s32.totalorder %s140, %s141
      %p152 = scmp.eq.s32.totalorder %s22, 0
      %p153 = por %p151, %p152
      %p154 = scmp.ne.s32.totalorder %s140, %s141
      %p155 = scmp.eq.s32.totalorder %s23, 1
      %p156 = por %p154, %p155
      %p158 = scmp.ne.s32.totalorder %s141, %s157
      %p159 = scmp.eq.s32.totalorder %s23, 0
      %p160 = por %p158, %p159
      %p161 = scmp.le.s32.totalorder 1, %s17
      %p162 = scmp.lt.s32.totalorder %s17, 3
      %p163 = pnand %p161, %p162
      %p164 = pneg %p163
      // Predicated region
      $region9: #{tpu_custom_call.1} parent=5 // pred_check
        _
      $region10: #{tpu_custom_call.1} parent=5 // pred_check_branch
        %166 = sbr.rel (%p163) target = $region12
      $region11: #{tpu_custom_call.1} parent=5 // pred_region
        %s167 = ssub.s32 %s17, 1
        // Predicated region
        $region13: #{tpu_custom_call.1} parent=11 // pred_check
          %p168 = pneg %p64
        $region14: #{tpu_custom_call.1} parent=11 // pred_check_branch
          %170 = sbr.rel (%p168) target = $region16
        $region15: #{tpu_custom_call.1} parent=11 // pred_region
          _
        $region16: #{tpu_custom_call.1} parent=11 // pred_fallthru
          _
        // Predicated region
        $region17: #{tpu_custom_call.1} parent=11 // pred_check
          %p171 = pneg %p85
        $region18: #{tpu_custom_call.1} parent=11 // pred_check_branch
          %173 = sbr.rel (%p171) target = $region20
        $region19: #{tpu_custom_call.1} parent=11 // pred_region
          _
        $region20: #{tpu_custom_call.1} parent=11 // pred_fallthru
          _
        // Predicated region
        $region21: #{tpu_custom_call.1} parent=11 // pred_check
          %p174 = pneg %p106
        $region22: #{tpu_custom_call.1} parent=11 // pred_check_branch
          %176 = sbr.rel (%p174) target = $region24
        $region23: #{tpu_custom_call.1} parent=11 // pred_region
          _
        $region24: #{tpu_custom_call.1} parent=11 // pred_fallthru
          _
        // Predicated region
        $region25: #{tpu_custom_call.1} parent=11 // pred_check
          %p177 = pneg %p127
        $region26: #{tpu_custom_call.1} parent=11 // pred_check_branch
          %179 = sbr.rel (%p177) target = $region28
        $region27: #{tpu_custom_call.1} parent=11 // pred_region
          _
        $region28: #{tpu_custom_call.1} parent=11 // pred_fallthru
          _
      $region12: #{tpu_custom_call.1} parent=5 // pred_fallthru
        _
      %p180 = scmp.lt.s32.totalorder %s17, 2
      // Predicated region
      $region29: #{tpu_custom_call.1} parent=5 // pred_check
        %p181 = pneg %p180
      $region30: #{tpu_custom_call.1} parent=5 // pred_check_branch
        %183 = sbr.rel (%p181) target = $region32
      $region31: #{tpu_custom_call.1} parent=5 // pred_region
        // Predicated region
        $region33: #{tpu_custom_call.1} parent=31 // pred_check
          %p184 = pneg %p37
        $region34: #{tpu_custom_call.1} parent=31 // pred_check_branch
          %186 = sbr.rel (%p184) target = $region36
        $region35: #{tpu_custom_call.1} parent=31 // pred_region
          %s187 = sand.u32 %s27, 1
          %s188 = scalar_lea.sflag [#allocation3], %s187
          %s189 = sand.u32 %s27, 1
          %s190 = smul.addr %s189, 16
          %s191 = scalar_lea.vmem [#allocation2], %s190
          %s193 = ssub.s32 256, 256
          %194 = vsyncadd %s188, %s193
          %s195 = smul.addr %s17, 2
          %s196 = smul.addr %s195, 128
          %s197 = scalar_lea.hbm %s0, %s196
          %s198 = sshll.u32 %s191, 4
          %s199 = int_to_ptr.vmem [resolvable:$true] %s198
          %204 = dma.hbm_to_vmem [thread:$0]  %s197, 256, %s199, %s188, 128, 128, 8
        $region36: #{tpu_custom_call.1} parent=31 // pred_fallthru
          _
      $region32: #{tpu_custom_call.1} parent=5 // pred_fallthru
        _
      %p205 = scmp.le.s32.totalorder 1, %s17
      %p206 = scmp.lt.s32.totalorder %s17, 3
      %p207 = pnand %p205, %p206
      %p208 = pneg %p207
      // Predicated region
      $region37: #{tpu_custom_call.1} parent=5 // pred_check
        _
      $region38: #{tpu_custom_call.1} parent=5 // pred_check_branch
        %210 = sbr.rel (%p207) target = $region40
      $region39: #{tpu_custom_call.1} parent=5 // pred_region
        %s211 = ssub.s32 %s17, 1
        %s212 = sand.u32 %s30, 1
        %s213 = scalar_lea.sflag [#allocation3], %s212
        %s214 = sand.u32 %s30, 1
        %s215 = smul.addr %s214, 16
        %s216 = scalar_lea.vmem [#allocation2], %s215
        // Predicated region
        $region41: #{tpu_custom_call.1} parent=39 // pred_check
          %p217 = pneg %p43
        $region42: #{tpu_custom_call.1} parent=39 // pred_check_branch
          %219 = sbr.rel (%p217) target = $region44
        $region43: #{tpu_custom_call.1} parent=39 // pred_region
          %220 = dma.done %s213, 256
        $region44: #{tpu_custom_call.1} parent=39 // pred_fallthru
          _
        %s221 = sand.u32 %s30, 1
        %s222 = scalar_lea.sflag [#allocation3], %s221
        %s223 = sand.u32 %s30, 1
        %s224 = smul.addr %s223, 16
        %s225 = scalar_lea.vmem [#allocation2], %s224
        %p226 = pneg %p43
        %p227 = pneg %p40
        %p228 = pneg %p64
        %p229 = pneg %p61
        %p230 = pneg %p85
        %p231 = pneg %p82
        %p232 = pneg %p106
        %p233 = pneg %p103
        %p234 = pneg %p127
        %p235 = pneg %p124
        %p236 = pneg %p153
        %p237 = pneg %p150
        %s238 = sand.u32 %s140, 1
        %s239 = scalar_lea.sflag [#allocation4], %s238
        %s240 = sand.u32 %s140, 1
        %s241 = smul.addr %s240, 24
        %s242 = scalar_lea.vmem [#allocation5], %s241
        %v243 = vld [vmem:[%s216] sm:$0xff]
        %v244 = vld [vmem:[%s216 + $0x8] sm:$0xff]
        %v245 = vld [vmem:[%s1] sm:$0xff]
        %v246 = vld [vmem:[%s1 + $0x8] sm:$0xff]
        %v247 = vld [vmem:[%s1 + $0x10] sm:$0xff]
        %v248 = vld [vmem:[%s2] sm:$0xff]
        %v249 = vld [vmem:[%s2 + $0x8] sm:$0xff]
        %v250 = vld [vmem:[%s2 + $0x10] sm:$0xff]
        %252 = vset.pattern.permute.xlu0 0
        %253 = vperm.xlu0 %252, %v248
        %v254 = vpop.permute.xlu0 %253
        %257 = vset.pattern.permute.xlu0 0
        %258 = vperm.xlu0 %257, %v249
        %v259 = vpop.permute.xlu0 %258
        %262 = vset.pattern.permute.xlu0 0
        %263 = vperm.xlu0 %262, %v250
        %v264 = vpop.permute.xlu0 %263
        %vm266 = vcmask 130048
        %v268 = vsel %vm266, %v245, 0
        %v271 = vsel %vm266, %v246, 0
        %v274 = vsel %vm266, %v247, 0
        %276 = vmatprep.subr.mxu0 0.0
        %277 = vmatpush1.msra.mxu0 %v243
        %278 = vmatprep.subr.mxu0 0.0
        %279 = vmatpush1.msra.mxu0 %v244
        %280 = vmatprep.subr.mxu0 0.0
        %281 = vmatpush1.msra.mxu0 0.0
        %282 = vmatprep.subr.mxu0 0.0
        %283 = vmatpush1.msra.mxu0 0.0
        %284 = vmatprep.subr.mxu0 0.0
        %285 = vmatpush1.msra.mxu0 0.0
        %286 = vmatprep.subr.mxu0 0.0
        %287 = vmatpush1.msra.mxu0 0.0
        %288 = vmatprep.subr.mxu0 0.0
        %289 = vmatpush1.msra.mxu0 0.0
        %290 = vmatprep.subr.mxu0 0.0
        %291 = vmatpush1.msra.mxu0 0.0
        %292 = vmatprep.subr.mxu0 0.0
        %293 = vmatpush1.msra.mxu0 0.0
        %294 = vmatprep.subr.mxu0 0.0
        %295 = vmatpush1.msra.mxu0 0.0
        %296 = vmatprep.subr.mxu0 0.0
        %297 = vmatpush1.msra.mxu0 0.0
        %298 = vmatprep.subr.mxu0 0.0
        %299 = vmatpush1.msra.mxu0 0.0
        %300 = vmatprep.subr.mxu0 0.0
        %301 = vmatpush1.msra.mxu0 0.0
        %302 = vmatprep.subr.mxu0 0.0
        %303 = vmatpush1.msra.mxu0 0.0
        %304 = vmatprep.subr.mxu0 0.0
        %305 = vmatpush1.msra.mxu0 0.0
        %306 = vmatprep.subr.mxu0 0.0
        %307 = vmatpush1.msra.mxu0 0.0
        %308 = vmatprep.subr.mxu0 0.0
        %309 = vmatpush1.msra.mxu0 0.0
        %310 = vmatprep.subr.mxu0 0.0
        %311 = vmatpush1.msra.mxu0 0.0
        %312 = vmatprep.subr.mxu0 0.0
        %313 = vmatpush1.msra.mxu0 0.0
        %314 = vmatprep.subr.mxu0 0.0
        %315 = vmatpush1.msra.mxu0 0.0
        %316 = vmatprep.subr.mxu0 0.0
        %317 = vmatpush1.msra.mxu0 0.0
        %318 = vmatprep.subr.mxu0 0.0
        %319 = vmatpush1.msra.mxu0 0.0
        %320 = vmatprep.subr.mxu0 0.0
        %321 = vmatpush1.msra.mxu0 0.0
        %322 = vmatprep.subr.mxu0 0.0
        %323 = vmatpush1.msra.mxu0 0.0
        %324 = vmatprep.subr.mxu0 0.0
        %325 = vmatpush1.msra.mxu0 0.0
        %326 = vmatprep.subr.mxu0 0.0
        %327 = vmatpush1.msra.mxu0 0.0
        %328 = vmatprep.subr.mxu0 0.0
        %329 = vmatpush1.msra.mxu0 0.0
        %330 = vmatprep.subr.mxu0 0.0
        %331 = vmatpush1.msra.mxu0 0.0
        %332 = vmatprep.subr.mxu0 0.0
        %333 = vmatpush1.msra.mxu0 0.0
        %334 = vmatprep.subr.mxu0 0.0
        %335 = vmatpush1.msra.mxu0 0.0
        %336 = vmatprep.subr.mxu0 0.0
        %337 = vmatpush1.msra.mxu0 0.0
        %338 = vmatprep.subr.mxu0 0.0
        %339 = vmatpush1.msra.mxu0 0.0
        %340 = vmatprep.mubr.f32.mxu0 0.0
        %341 = vmatmul.mubr.f32.gmra.mrb[0].mxu0 %v268
        %v342 = vpop.f32.mrb[0].mxu0
        %v343 = vadd.f32 %v254, %v342
        %v344 = vpop.f32.mrb[0].mxu0
        %345 = vmatprep.mubr.f32.mxu0 0.0
        %346 = vmatmul.mubr.f32.gmra.mrb[0].mxu0 %v271
        %v347 = vpop.f32.mrb[0].mxu0
        %v348 = vadd.f32 %v259, %v347
        %v349 = vpop.f32.mrb[0].mxu0
        %350 = vmatprep.mubr.f32.mxu0 0.0
        %351 = vmatmul.mubr.f32.gmra.mrb[0].mxu0 %v274
        %v352 = vpop.f32.mrb[0].mxu0
        %v353 = vadd.f32 %v264, %v352
        %v354 = vpop.f32.mrb[0].mxu0
        %355 = vdwg.mxu0
        %359 = vrot.lane.b32.xlu0 %v343, 4
        %v360 = vpop.permute.xlu0 %359
        %361 = vrot.lane.b32.xlu0 %v348, 4
        %v362 = vpop.permute.xlu0 %361
        %363 = vrot.lane.b32.xlu0 %v353, 4
        %v364 = vpop.permute.xlu0 %363
        %vm368 = vcmask 31744
        %v369 = vsel %vm368, 0.0, %v360
        %v370 = vsel %vm368, 0.0, %v362
        %v371 = vsel %vm368, 0.0, %v364
        %v372 = vld [vmem:[%s3] sm:$0xff]
        %v373 = vld [vmem:[%s3 + $0x8] sm:$0xff]
        %v374 = vld [vmem:[%s3 + $0x10] sm:$0xff]
        %s375 = scalar_lea.vmem %s3, 24
        %v376 = vld [vmem:[%s375] sm:$0xff]
        %v377 = vld [vmem:[%s375 + $0x8] sm:$0xff]
        %v378 = vld [vmem:[%s375 + $0x10] sm:$0xff]
        %382 = vrot.lane.b32.xlu0 %v369, 126
        %v383 = vpop.permute.xlu0 %382
        %384 = vrot.lane.b32.xlu0 %v360, 126
        %v385 = vpop.permute.xlu0 %384
        %386 = vrot.lane.b32.xlu0 %v370, 126
        %v387 = vpop.permute.xlu0 %386
        %388 = vrot.lane.b32.xlu0 %v362, 126
        %v389 = vpop.permute.xlu0 %388
        %390 = vrot.lane.b32.xlu0 %v371, 126
        %v391 = vpop.permute.xlu0 %390
        %392 = vrot.lane.b32.xlu0 %v364, 126
        %v393 = vpop.permute.xlu0 %392
        %vm394 = vcmask 1031168
        %v395 = vsel %vm394, %v383, %v385
        %v396 = vsel %vm394, %v387, %v389
        %v397 = vsel %vm394, %v391, %v393
        %vm401 = vcmask 195584
        %v403 = vsel %vm401, %v376, 0
        %v406 = vsel %vm401, %v377, 0
        %v409 = vsel %vm401, %v378, 0
        %411 = vmatprep.subr.mxu0 0.0
        %412 = vmatpush1.msra.mxu0 %v395
        %413 = vmatprep.subr.mxu0 0.0
        %414 = vmatpush1.msra.mxu0 %v396
        %415 = vmatprep.subr.mxu0 0.0
        %416 = vmatpush1.msra.mxu0 %v397
        %417 = vmatprep.subr.mxu0 0.0
        %418 = vmatpush1.msra.mxu0 0.0
        %419 = vmatprep.subr.mxu0 0.0
        %420 = vmatpush1.msra.mxu0 0.0
        %421 = vmatprep.subr.mxu0 0.0
        %422 = vmatpush1.msra.mxu0 0.0
        %423 = vmatprep.subr.mxu0 0.0
        %424 = vmatpush1.msra.mxu0 0.0
        %425 = vmatprep.subr.mxu0 0.0
        %426 = vmatpush1.msra.mxu0 0.0
        %427 = vmatprep.subr.mxu0 0.0
        %428 = vmatpush1.msra.mxu0 0.0
        %429 = vmatprep.subr.mxu0 0.0
        %430 = vmatpush1.msra.mxu0 0.0
        %431 = vmatprep.subr.mxu0 0.0
        %432 = vmatpush1.msra.mxu0 0.0
        %433 = vmatprep.subr.mxu0 0.0
        %434 = vmatpush1.msra.mxu0 0.0
        %435 = vmatprep.subr.mxu0 0.0
        %436 = vmatpush1.msra.mxu0 0.0
        %437 = vmatprep.subr.mxu0 0.0
        %438 = vmatpush1.msra.mxu0 0.0
        %439 = vmatprep.subr.mxu0 0.0
        %440 = vmatpush1.msra.mxu0 0.0
        %441 = vmatprep.subr.mxu0 0.0
        %442 = vmatpush1.msra.mxu0 0.0
        %443 = vmatprep.subr.mxu0 0.0
        %444 = vmatpush1.msra.mxu0 0.0
        %445 = vmatprep.subr.mxu0 0.0
        %446 = vmatpush1.msra.mxu0 0.0
        %447 = vmatprep.subr.mxu0 0.0
        %448 = vmatpush1.msra.mxu0 0.0
        %449 = vmatprep.subr.mxu0 0.0
        %450 = vmatpush1.msra.mxu0 0.0
        %451 = vmatprep.subr.mxu0 0.0
        %452 = vmatpush1.msra.mxu0 0.0
        %453 = vmatprep.subr.mxu0 0.0
        %454 = vmatpush1.msra.mxu0 0.0
        %455 = vmatprep.subr.mxu0 0.0
        %456 = vmatpush1.msra.mxu0 0.0
        %457 = vmatprep.subr.mxu0 0.0
        %458 = vmatpush1.msra.mxu0 0.0
        %459 = vmatprep.subr.mxu0 0.0
        %460 = vmatpush1.msra.mxu0 0.0
        %461 = vmatprep.subr.mxu0 0.0
        %462 = vmatpush1.msra.mxu0 0.0
        %463 = vmatprep.subr.mxu0 0.0
        %464 = vmatpush1.msra.mxu0 0.0
        %465 = vmatprep.subr.mxu0 0.0
        %466 = vmatpush1.msra.mxu0 0.0
        %467 = vmatprep.subr.mxu0 0.0
        %468 = vmatpush1.msra.mxu0 0.0
        %469 = vmatprep.subr.mxu0 0.0
        %470 = vmatpush1.msra.mxu0 0.0
        %471 = vmatprep.subr.mxu0 0.0
        %472 = vmatpush1.msra.mxu0 0.0
        %473 = vmatprep.subr.mxu0 0.0
        %474 = vmatpush1.msra.mxu0 0.0
        %475 = vmatprep.mubr.f32.mxu0 0.0
        %476 = vmatmul.mubr.f32.gmra.mrb[0].mxu0 %v403
        %v477 = vpop.f32.mrb[0].mxu0
        %v478 = vadd.f32 0.0, %v477
        %v479 = vpop.f32.mrb[0].mxu0
        %480 = vmatprep.mubr.f32.mxu0 0.0
        %481 = vmatmul.mubr.f32.gmra.mrb[0].mxu0 %v406
        %v482 = vpop.f32.mrb[0].mxu0
        %v483 = vadd.f32 0.0, %v482
        %v484 = vpop.f32.mrb[0].mxu0
        %485 = vmatprep.mubr.f32.mxu0 0.0
        %486 = vmatmul.mubr.f32.gmra.mrb[0].mxu0 %v409
        %v487 = vpop.f32.mrb[0].mxu0
        %v488 = vadd.f32 0.0, %v487
        %v489 = vpop.f32.mrb[0].mxu0
        %490 = vdwg.mxu0
        %v492 = vsel %vm401, %v372, 0
        %v495 = vsel %vm401, %v373, 0
        %v498 = vsel %vm401, %v374, 0
        %500 = vmatprep.subr.mxu0 0.0
        %501 = vmatpush1.msra.mxu0 %v369
        %502 = vmatprep.subr.mxu0 0.0
        %503 = vmatpush1.msra.mxu0 %v370
        %504 = vmatprep.subr.mxu0 0.0
        %505 = vmatpush1.msra.mxu0 %v371
        %506 = vmatprep.subr.mxu0 0.0
        %507 = vmatpush1.msra.mxu0 0.0
        %508 = vmatprep.subr.mxu0 0.0
        %509 = vmatpush1.msra.mxu0 0.0
        %510 = vmatprep.subr.mxu0 0.0
        %511 = vmatpush1.msra.mxu0 0.0
        %512 = vmatprep.subr.mxu0 0.0
        %513 = vmatpush1.msra.mxu0 0.0
        %514 = vmatprep.subr.mxu0 0.0
        %515 = vmatpush1.msra.mxu0 0.0
        %516 = vmatprep.subr.mxu0 0.0
        %517 = vmatpush1.msra.mxu0 0.0
        %518 = vmatprep.subr.mxu0 0.0
        %519 = vmatpush1.msra.mxu0 0.0
        %520 = vmatprep.subr.mxu0 0.0
        %521 = vmatpush1.msra.mxu0 0.0
        %522 = vmatprep.subr.mxu0 0.0
        %523 = vmatpush1.msra.mxu0 0.0
        %524 = vmatprep.subr.mxu0 0.0
        %525 = vmatpush1.msra.mxu0 0.0
        %526 = vmatprep.subr.mxu0 0.0
        %527 = vmatpush1.msra.mxu0 0.0
        %528 = vmatprep.subr.mxu0 0.0
        %529 = vmatpush1.msra.mxu0 0.0
        %530 = vmatprep.subr.mxu0 0.0
        %531 = vmatpush1.msra.mxu0 0.0
        %532 = vmatprep.subr.mxu0 0.0
        %533 = vmatpush1.msra.mxu0 0.0
        %534 = vmatprep.subr.mxu0 0.0
        %535 = vmatpush1.msra.mxu0 0.0
        %536 = vmatprep.subr.mxu0 0.0
        %537 = vmatpush1.msra.mxu0 0.0
        %538 = vmatprep.subr.mxu0 0.0
        %539 = vmatpush1.msra.mxu0 0.0
        %540 = vmatprep.subr.mxu0 0.0
        %541 = vmatpush1.msra.mxu0 0.0
        %542 = vmatprep.subr.mxu0 0.0
        %543 = vmatpush1.msra.mxu0 0.0
        %544 = vmatprep.subr.mxu0 0.0
        %545 = vmatpush1.msra.mxu0 0.0
        %546 = vmatprep.subr.mxu0 0.0
        %547 = vmatpush1.msra.mxu0 0.0
        %548 = vmatprep.subr.mxu0 0.0
        %549 = vmatpush1.msra.mxu0 0.0
        %550 = vmatprep.subr.mxu0 0.0
        %551 = vmatpush1.msra.mxu0 0.0
        %552 = vmatprep.subr.mxu0 0.0
        %553 = vmatpush1.msra.mxu0 0.0
        %554 = vmatprep.subr.mxu0 0.0
        %555 = vmatpush1.msra.mxu0 0.0
        %556 = vmatprep.subr.mxu0 0.0
        %557 = vmatpush1.msra.mxu0 0.0
        %558 = vmatprep.subr.mxu0 0.0
        %559 = vmatpush1.msra.mxu0 0.0
        %560 = vmatprep.subr.mxu0 0.0
        %561 = vmatpush1.msra.mxu0 0.0
        %562 = vmatprep.subr.mxu0 0.0
        %563 = vmatpush1.msra.mxu0 0.0
        %564 = vmatprep.mubr.f32.mxu0 0.0
        %565 = vmatmul.mubr.f32.gmra.mrb[0].mxu0 %v492
        %v566 = vpop.f32.mrb[0].mxu0
        %v567 = vadd.f32 %v478, %v566
        %v568 = vpop.f32.mrb[0].mxu0
        %569 = vmatprep.mubr.f32.mxu0 0.0
        %570 = vmatmul.mubr.f32.gmra.mrb[0].mxu0 %v495
        %v571 = vpop.f32.mrb[0].mxu0
        %v572 = vadd.f32 %v483, %v571
        %v573 = vpop.f32.mrb[0].mxu0
        %574 = vmatprep.mubr.f32.mxu0 0.0
        %575 = vmatmul.mubr.f32.gmra.mrb[0].mxu0 %v498
        %v576 = vpop.f32.mrb[0].mxu0
        %v577 = vadd.f32 %v488, %v576
        %v578 = vpop.f32.mrb[0].mxu0
        %579 = vdwg.mxu0
        %s580 = scalar_lea.vmem %s3, 48
        %v581 = vld [vmem:[%s580] sm:$0xff]
        %v582 = vld [vmem:[%s580 + $0x8] sm:$0xff]
        %v583 = vld [vmem:[%s580 + $0x10] sm:$0xff]
        %584 = vrot.lane.b32.xlu0 %v369, 124
        %v585 = vpop.permute.xlu0 %584
        %586 = vrot.lane.b32.xlu0 %v360, 124
        %v587 = vpop.permute.xlu0 %586
        %588 = vrot.lane.b32.xlu0 %v370, 124
        %v589 = vpop.permute.xlu0 %588
        %590 = vrot.lane.b32.xlu0 %v362, 124
        %v591 = vpop.permute.xlu0 %590
        %592 = vrot.lane.b32.xlu0 %v371, 124
        %v593 = vpop.permute.xlu0 %592
        %594 = vrot.lane.b32.xlu0 %v364, 124
        %v595 = vpop.permute.xlu0 %594
        %vm596 = vcmask 1014784
        %v597 = vsel %vm596, %v585, %v587
        %v598 = vsel %vm596, %v589, %v591
        %v599 = vsel %vm596, %v593, %v595
        %v604 = vsel %vm401, %v581, 0
        %v607 = vsel %vm401, %v582, 0
        %v610 = vsel %vm401, %v583, 0
        %612 = vmatprep.subr.mxu0 0.0
        %613 = vmatpush1.msra.mxu0 %v597
        %614 = vmatprep.subr.mxu0 0.0
        %615 = vmatpush1.msra.mxu0 %v598
        %616 = vmatprep.subr.mxu0 0.0
        %617 = vmatpush1.msra.mxu0 %v599
        %618 = vmatprep.subr.mxu0 0.0
        %619 = vmatpush1.msra.mxu0 0.0
        %620 = vmatprep.subr.mxu0 0.0
        %621 = vmatpush1.msra.mxu0 0.0
        %622 = vmatprep.subr.mxu0 0.0
        %623 = vmatpush1.msra.mxu0 0.0
        %624 = vmatprep.subr.mxu0 0.0
        %625 = vmatpush1.msra.mxu0 0.0
        %626 = vmatprep.subr.mxu0 0.0
        %627 = vmatpush1.msra.mxu0 0.0
        %628 = vmatprep.subr.mxu0 0.0
        %629 = vmatpush1.msra.mxu0 0.0
        %630 = vmatprep.subr.mxu0 0.0
        %631 = vmatpush1.msra.mxu0 0.0
        %632 = vmatprep.subr.mxu0 0.0
        %633 = vmatpush1.msra.mxu0 0.0
        %634 = vmatprep.subr.mxu0 0.0
        %635 = vmatpush1.msra.mxu0 0.0
        %636 = vmatprep.subr.mxu0 0.0
        %637 = vmatpush1.msra.mxu0 0.0
        %638 = vmatprep.subr.mxu0 0.0
        %639 = vmatpush1.msra.mxu0 0.0
        %640 = vmatprep.subr.mxu0 0.0
        %641 = vmatpush1.msra.mxu0 0.0
        %642 = vmatprep.subr.mxu0 0.0
        %643 = vmatpush1.msra.mxu0 0.0
        %644 = vmatprep.subr.mxu0 0.0
        %645 = vmatpush1.msra.mxu0 0.0
        %646 = vmatprep.subr.mxu0 0.0
        %647 = vmatpush1.msra.mxu0 0.0
        %648 = vmatprep.subr.mxu0 0.0
        %649 = vmatpush1.msra.mxu0 0.0
        %650 = vmatprep.subr.mxu0 0.0
        %651 = vmatpush1.msra.mxu0 0.0
        %652 = vmatprep.subr.mxu0 0.0
        %653 = vmatpush1.msra.mxu0 0.0
        %654 = vmatprep.subr.mxu0 0.0
        %655 = vmatpush1.msra.mxu0 0.0
        %656 = vmatprep.subr.mxu0 0.0
        %657 = vmatpush1.msra.mxu0 0.0
        %658 = vmatprep.subr.mxu0 0.0
        %659 = vmatpush1.msra.mxu0 0.0
        %660 = vmatprep.subr.mxu0 0.0
        %661 = vmatpush1.msra.mxu0 0.0
        %662 = vmatprep.subr.mxu0 0.0
        %663 = vmatpush1.msra.mxu0 0.0
        %664 = vmatprep.subr.mxu0 0.0
        %665 = vmatpush1.msra.mxu0 0.0
        %666 = vmatprep.subr.mxu0 0.0
        %667 = vmatpush1.msra.mxu0 0.0
        %668 = vmatprep.subr.mxu0 0.0
        %669 = vmatpush1.msra.mxu0 0.0
        %670 = vmatprep.subr.mxu0 0.0
        %671 = vmatpush1.msra.mxu0 0.0
        %672 = vmatprep.subr.mxu0 0.0
        %673 = vmatpush1.msra.mxu0 0.0
        %674 = vmatprep.subr.mxu0 0.0
        %675 = vmatpush1.msra.mxu0 0.0
        %676 = vmatprep.mubr.f32.mxu0 0.0
        %677 = vmatmul.mubr.f32.gmra.mrb[0].mxu0 %v604
        %v678 = vpop.f32.mrb[0].mxu0
        %v679 = vadd.f32 0.0, %v678
        %v680 = vpop.f32.mrb[0].mxu0
        %681 = vmatprep.mubr.f32.mxu0 0.0
        %682 = vmatmul.mubr.f32.gmra.mrb[0].mxu0 %v607
        %v683 = vpop.f32.mrb[0].mxu0
        %v684 = vadd.f32 0.0, %v683
        %v685 = vpop.f32.mrb[0].mxu0
        %686 = vmatprep.mubr.f32.mxu0 0.0
        %687 = vmatmul.mubr.f32.gmra.mrb[0].mxu0 %v610
        %v688 = vpop.f32.mrb[0].mxu0
        %v689 = vadd.f32 0.0, %v688
        %v690 = vpop.f32.mrb[0].mxu0
        %691 = vdwg.mxu0
        %v692 = vadd.f32 %v567, %v679
        %v693 = vadd.f32 %v572, %v684
        %v694 = vadd.f32 %v577, %v689
        %v695 = vld [vmem:[%s4] sm:$0xff]
        %v696 = vld [vmem:[%s4 + $0x8] sm:$0xff]
        %v697 = vld [vmem:[%s4 + $0x10] sm:$0xff]
        %699 = vset.pattern.permute.xlu0 0
        %700 = vperm.xlu0 %699, %v695
        %v701 = vpop.permute.xlu0 %700
        %704 = vset.pattern.permute.xlu0 0
        %705 = vperm.xlu0 %704, %v696
        %v706 = vpop.permute.xlu0 %705
        %709 = vset.pattern.permute.xlu0 0
        %710 = vperm.xlu0 %709, %v697
        %v711 = vpop.permute.xlu0 %710
        %v713 = vadd.f32 %v692, %v701
        %v714 = vadd.f32 %v693, %v706
        %v715 = vadd.f32 %v694, %v711
        %v716 = vmax.f32 %v713, 0.0
        %v717 = vmax.f32 %v714, 0.0
        %v718 = vmax.f32 %v715, 0.0
        %v719 = vadd.f32 %v343, %v716
        %v720 = vadd.f32 %v348, %v717
        %v721 = vadd.f32 %v353, %v718
        %v722 = vmax.f32 %v719, 0.0
        %v723 = vmax.f32 %v720, 0.0
        %v724 = vmax.f32 %v721, 0.0
        %725 = vst [vmem:[%s242] sm:$0xff] %v722
        %726 = vst [vmem:[%s242 + $0x8] sm:$0xff] %v723
        %727 = vst [vmem:[%s242 + $0x10] sm:$0xff] %v724
        %s728 = sand.u32 %s140, 1
        %s729 = scalar_lea.sflag [#allocation4], %s728
        %s730 = sand.u32 %s140, 1
        %s731 = smul.addr %s730, 24
        %s732 = scalar_lea.vmem [#allocation5], %s731
        // Predicated region
        $region45: #{tpu_custom_call.1} parent=39 // pred_check
          %p733 = pneg %p150
        $region46: #{tpu_custom_call.1} parent=39 // pred_check_branch
          %735 = sbr.rel (%p733) target = $region48
        $region47: #{tpu_custom_call.1} parent=39 // pred_region
          %s737 = ssub.s32 384, 384
          %738 = vsyncadd %s729, %s737
          %s739 = smul.addr %s22, 3
          %s740 = smul.addr %s739, 128
          %s741 = scalar_lea.hbm %s5, %s740
          %s742 = sshll.u32 %s732, 4
          %s743 = int_to_ptr.vmem [resolvable:$true] %s742
          %748 = dma.vmem_to_hbm [thread:$0]  %s743, 384, %s741, %s729, 128, 128, 8
        $region48: #{tpu_custom_call.1} parent=39 // pred_fallthru
          _
      $region40: #{tpu_custom_call.1} parent=5 // pred_fallthru
        _
      %p749 = scmp.le.s32.totalorder 2, %s17
      // Predicated region
      $region49: #{tpu_custom_call.1} parent=5 // pred_check
        %p750 = pneg %p749
      $region50: #{tpu_custom_call.1} parent=5 // pred_check_branch
        %752 = sbr.rel (%p750) target = $region52
      $region51: #{tpu_custom_call.1} parent=5 // pred_region
        %s753 = ssub.s32 %s17, 2
        // Predicated region
        $region53: #{tpu_custom_call.1} parent=51 // pred_check
          %p754 = pneg %p156
        $region54: #{tpu_custom_call.1} parent=51 // pred_check_branch
          %756 = sbr.rel (%p754) target = $region56
        $region55: #{tpu_custom_call.1} parent=51 // pred_region
          %s757 = sand.u32 %s141, 1
          %s758 = scalar_lea.sflag [#allocation4], %s757
          %s759 = sand.u32 %s141, 1
          %s760 = smul.addr %s759, 24
          %s761 = scalar_lea.vmem [#allocation5], %s760
          %762 = dma.done %s758, 384
        $region56: #{tpu_custom_call.1} parent=51 // pred_fallthru
          _
      $region52: #{tpu_custom_call.1} parent=5 // pred_fallthru
        _
    $region6: #{tpu_custom_call.1} parent=1 // loop_footer
      %s21 = sadd.s32 1, %s17
    $region7: #{tpu_custom_call.1} parent=1 // loop_footer_branch
      %16 = sbr.rel target = $region3
    $region8: #{tpu_custom_call.1} parent=1 // loop_exit
      _
    %763 = vsyncpa [#allocation3], 1
    %s764 = scalar_lea.sflag [#allocation3], 1
    %765 = vsyncpa %s764, 1
    %766 = vsyncpa [#allocation4], 1
    %s767 = scalar_lea.sflag [#allocation4], 1
    %768 = vsyncpa %s767, 1

</llo_original>
